<compile_context>
chip_gen: v5e
topology: v5e:2x2
jax: 0.10.0
libtpu: 0.0.40
codegen_flags: <defaults>
</compile_context>

<pallas_src>
import functools

import jax
import jax.numpy as jnp
from jax.experimental import pallas as pl
from jax.experimental.pallas import tpu as pltpu

LEAKY_SLOPE = 0.01   # nn.LeakyReLU default negative_slope
_SUBLANE = 8         # sublane granularity (second-to-last dim)


def _leaky_relu(v):
    # max-form: 1 mul + 1 max (vs cmp + select + mul); identical for slope in (0,1).
    return jnp.maximum(v, LEAKY_SLOPE * v)


def _round_up(x, m):
    return (x + m - 1) // m * m


def mlp_kernel(x_ref, w1_ref, b1_ref, w2_ref, b2_ref, o_ref):
    # x_ref: (TM, D) f32   w1_ref: (D, H) bf16   b1_ref: (1, H) f32
    # w2_ref: (H, H) bf16  b2_ref: (1, H) f32    o_ref: (TM, H) f32
    x = x_ref[...].astype(w1_ref.dtype)                     # bf16 operands for the MXU
    h = jnp.dot(x, w1_ref[...], preferred_element_type=jnp.float32)
    h = _leaky_relu(h + b1_ref[...])                        # f32 epilogue
    y = jnp.dot(h.astype(w2_ref.dtype), w2_ref[...],
                preferred_element_type=jnp.float32)
    y = _leaky_relu(y + b2_ref[...])
    o_ref[...] = y.astype(o_ref.dtype)


def _tpu_config():
    """Generation-aware knobs: (num_tensorcores, default block_m, vmem budget)."""
    kind = ""
    try:
        kind = (jax.devices()[0].device_kind or "").lower()
    except Exception:
        pass
    vmem_cap = None
    try:
        vmem_cap = int(pltpu.get_tpu_info().vmem_capacity_bytes)
    except Exception:
        pass

    if "v7" in kind:
        num_tc, default_bm, headroom = 2, 512, 16 << 20       # 64 MiB/TC, 2 TCs
        if vmem_cap is None:
            vmem_cap = 64 << 20
    elif "v5" in kind or "v6" in kind:
        num_tc, default_bm, headroom = 1, 1024, 28 << 20       # 128 MiB/TC
        if vmem_cap is None:
            vmem_cap = 128 << 20
    else:
        num_tc, default_bm, headroom = 1, 512, 16 << 20        # unknown: conservative
        if vmem_cap is None:
            vmem_cap = 64 << 20

    budget = max(vmem_cap - headroom, 32 << 20)
    return num_tc, default_bm, budget


@functools.partial(jax.jit, static_argnames=("block_m", "vmem_limit"))
def _mlp_forward_impl(x, w1, b1, w2, b2, *, block_m, vmem_limit):
    M, D = x.shape
    H = w1.shape[1]
    grid = (pl.cdiv(M, block_m),)

    # Half-size resident weights: bf16 operands for the MXU (f32 accumulate).
    w1b = w1.astype(jnp.bfloat16)
    w2b = w2.astype(jnp.bfloat16)

    cost = pl.CostEstimate(
        flops=2 * M * (D * H + H * H),
        transcendentals=0,
        bytes_accessed=(4 * M * D                 # x (f32)
                        + 2 * (D * H + H * H)     # weights (bf16)
                        + 4 * 2 * H               # biases (f32)
                        + 4 * M * H),             # output (f32)
    )

    # Constant index_map operands: keep a single VMEM buffer (no double-buffer).
    resident = dict(pipeline_mode=pl.Buffered(1))

    return pl.pallas_call(
        mlp_kernel,
        out_shape=jax.ShapeDtypeStruct((M, H), x.dtype),
        grid_spec=pltpu.PrefetchScalarGridSpec(
            num_scalar_prefetch=0,
            grid=grid,
            in_specs=[
                pl.BlockSpec((block_m, D), lambda i: (i, 0)),         # x row tile
                pl.BlockSpec((D, H), lambda i: (0, 0), **resident),   # w1 (bf16)
                pl.BlockSpec((1, H), lambda i: (0, 0), **resident),   # b1 (f32)
                pl.BlockSpec((H, H), lambda i: (0, 0), **resident),   # w2 (bf16)
                pl.BlockSpec((1, H), lambda i: (0, 0), **resident),   # b2 (f32)
            ],
            out_specs=pl.BlockSpec((block_m, H), lambda i: (i, 0)),
        ),
        compiler_params=pltpu.CompilerParams(
            dimension_semantics=("parallel",),   # row tiles shard across TCs (v7x)
            vmem_limit_bytes=vmem_limit,
        ),
        cost_estimate=cost,
    )(x, w1b, b1, w2b, b2)


def mlp_forward(x, w1, b1, w2, b2, *, block_m=None):
    """x: (M, D). w1: (D, H), b1: (1, H), w2: (H, H), b2: (1, H) -> (M, H) f32."""
    M, D = x.shape
    H = w1.shape[1]

    num_tc, default_bm, vmem_budget = _tpu_config()
    if block_m is None:
        block_m = default_bm
    # Never bigger than the (sublane-rounded) problem.
    block_m = min(block_m, _round_up(M, _SUBLANE))
    # On multi-TC chips make sure the grid spans all cores (>=1 tile per core).
    if num_tc > 1:
        per_core = max(_round_up(pl.cdiv(M, num_tc), _SUBLANE), _SUBLANE)
        block_m = min(block_m, per_core)
    block_m = max(int(block_m), _SUBLANE)

    # VMEM footprint: double-buffered f32 x/out tiles + single-buffered bf16
    # weights + f32 biases; 2x margin, clamped to the per-generation budget.
    footprint = (4 * 2 * block_m * D + 4 * 2 * block_m * H
                 + 2 * (D * H + H * H) + 4 * 2 * H)
    vmem_limit = int(min(max(2 * footprint + (4 << 20), 16 << 20), vmem_budget))

    return _mlp_forward_impl(x, w1, b1, w2, b2,
                             block_m=block_m, vmem_limit=vmem_limit)


def reference_mlp(x, w1, b1, w2, b2):
    h = _leaky_relu(x @ w1 + b1)
    return _leaky_relu(h @ w2 + b2)


if __name__ == "__main__":
    # Small shapes consistent with the module: input_dim=32, num_hiddens=32,
    # M = batch * seq = 2 * 8 = 16 rows.
    input_dim = 32
    num_hiddens = 32
    batch, seq = 2, 8
    M = batch * seq

    key = jax.random.PRNGKey(0)
    kx, kw1, kb1, kw2, kb2 = jax.random.split(key, 5)

    x = jax.random.normal(kx, (M, input_dim), dtype=jnp.float32)

    # Deterministic PyTorch-style Linear init: U(-1/sqrt(fan_in), 1/sqrt(fan_in)).
    bound1 = 1.0 / (input_dim ** 0.5)
    w1 = jax.random.uniform(kw1, (input_dim, num_hiddens),
                            minval=-bound1, maxval=bound1, dtype=jnp.float32)
    b1 = jax.random.uniform(kb1, (1, num_hiddens),
                            minval=-bound1, maxval=bound1, dtype=jnp.float32)
    bound2 = 1.0 / (num_hiddens ** 0.5)
    w2 = jax.random.uniform(kw2, (num_hiddens, num_hiddens),
                            minval=-bound2, maxval=bound2, dtype=jnp.float32)
    b2 = jax.random.uniform(kb2, (1, num_hiddens),
                            minval=-bound2, maxval=bound2, dtype=jnp.float32)

    out = mlp_forward(x, w1, b1, w2, b2)
    out = jax.block_until_ready(out)

    ref = reference_mlp(x, w1, b1, w2, b2)
    assert out.shape == (M, num_hiddens)
    # bf16 MXU operands (f32 accumulate) -> loosen tolerance vs the f32 reference.
    assert jnp.allclose(out, ref, atol=5e-2, rtol=5e-2), \
        float(jnp.max(jnp.abs(out - ref)))

    print("KERNEL_OK")
</pallas_src>

<mosaic_0001>
module attributes {stable_mosaic.version = 11 : i64} {
  func.func @mlp_kernel(%arg0: i32, %arg1: memref<16x32xf32, #tpu.memory_space<vmem>>, %arg2: memref<32x32xbf16, #tpu.memory_space<vmem>>, %arg3: memref<1x32xf32, #tpu.memory_space<vmem>>, %arg4: memref<32x32xbf16, #tpu.memory_space<vmem>>, %arg5: memref<1x32xf32, #tpu.memory_space<vmem>>, %arg6: memref<16x32xf32, #tpu.memory_space<vmem>>) attributes {dimension_semantics = [#tpu.dimension_semantics<parallel>], iteration_bounds = array<i64: 1>, scalar_prefetch = 0 : i64, scratch_operands = 0 : i64, tpu.core_type = #tpu.core_type<tc>, window_params = [{transform_indices = @transform_0, window_bounds = array<i64: 16, 32>}, {pipeline_mode = #tpu.pipeline_mode<synchronous>, transform_indices = @transform_1, window_bounds = array<i64: 32, 32>}, {pipeline_mode = #tpu.pipeline_mode<synchronous>, transform_indices = @transform_2, window_bounds = array<i64: 1, 32>}, {pipeline_mode = #tpu.pipeline_mode<synchronous>, transform_indices = @transform_3, window_bounds = array<i64: 32, 32>}, {pipeline_mode = #tpu.pipeline_mode<synchronous>, transform_indices = @transform_4, window_bounds = array<i64: 1, 32>}, {transform_indices = @transform_5, window_bounds = array<i64: 16, 32>}]} {
    %c0 = arith.constant 0 : index
    %c0_0 = arith.constant 0 : index
    %0 = vector.load %arg1[%c0, %c0_0] : memref<16x32xf32, #tpu.memory_space<vmem>>, vector<16x32xf32>
    %1 = arith.truncf %0 : vector<16x32xf32> to vector<16x32xbf16>
    %c0_1 = arith.constant 0 : index
    %c0_2 = arith.constant 0 : index
    %2 = vector.load %arg2[%c0_1, %c0_2] : memref<32x32xbf16, #tpu.memory_space<vmem>>, vector<32x32xbf16>
    %cst = arith.constant dense<0.000000e+00> : vector<16x32xf32>
    %3 = tpu.matmul %1, %2, %cst {dimension_numbers = #tpu.dot_dimension_numbers<[1], [0], [0], [1], [0, 0, 1, 1], [], []>} : vector<16x32xbf16>, vector<32x32xbf16>, vector<16x32xf32> -> vector<16x32xf32>
    %c0_3 = arith.constant 0 : index
    %c0_4 = arith.constant 0 : index
    %4 = vector.load %arg3[%c0_3, %c0_4] : memref<1x32xf32, #tpu.memory_space<vmem>>, vector<1x32xf32>
    %5 = vector.broadcast %4 : vector<1x32xf32> to vector<16x32xf32>
    %6 = arith.addf %3, %5 : vector<16x32xf32>
    %cst_5 = arith.constant 0.00999999977 : f32
    %7 = vector.broadcast %cst_5 : f32 to vector<16x32xf32>
    %8 = arith.mulf %7, %6 : vector<16x32xf32>
    %9 = arith.maximumf %6, %8 : vector<16x32xf32>
    %10 = arith.truncf %9 : vector<16x32xf32> to vector<16x32xbf16>
    %c0_6 = arith.constant 0 : index
    %c0_7 = arith.constant 0 : index
    %11 = vector.load %arg4[%c0_6, %c0_7] : memref<32x32xbf16, #tpu.memory_space<vmem>>, vector<32x32xbf16>
    %cst_8 = arith.constant dense<0.000000e+00> : vector<16x32xf32>
    %12 = tpu.matmul %10, %11, %cst_8 {dimension_numbers = #tpu.dot_dimension_numbers<[1], [0], [0], [1], [0, 0, 1, 1], [], []>} : vector<16x32xbf16>, vector<32x32xbf16>, vector<16x32xf32> -> vector<16x32xf32>
    %c0_9 = arith.constant 0 : index
    %c0_10 = arith.constant 0 : index
    %13 = vector.load %arg5[%c0_9, %c0_10] : memref<1x32xf32, #tpu.memory_space<vmem>>, vector<1x32xf32>
    %14 = vector.broadcast %13 : vector<1x32xf32> to vector<16x32xf32>
    %15 = arith.addf %12, %14 : vector<16x32xf32>
    %cst_11 = arith.constant 0.00999999977 : f32
    %16 = vector.broadcast %cst_11 : f32 to vector<16x32xf32>
    %17 = arith.mulf %16, %15 : vector<16x32xf32>
    %18 = arith.maximumf %15, %17 : vector<16x32xf32>
    %c0_12 = arith.constant 0 : index
    %c0_13 = arith.constant 0 : index
    %19 = vector.load %arg6[%c0_12, %c0_13] : memref<16x32xf32, #tpu.memory_space<vmem>>, vector<16x32xf32>
    tpu.vector_store %arg6[%c0_12, %c0_13], %18 {strides = array<i32>} : memref<16x32xf32, #tpu.memory_space<vmem>>, vector<16x32xf32>,
    return
  }
  func.func @transform_0(%arg0: i32) -> (i32, i32) {
    %c0_i32 = arith.constant 0 : i32
    %c0_i32_0 = arith.constant 0 : i32
    return %arg0, %c0_i32 : i32, i32
  }
  func.func @transform_1(%arg0: i32) -> (i32, i32) {
    %c0_i32 = arith.constant 0 : i32
    %c0_i32_0 = arith.constant 0 : i32
    %c0_i32_1 = arith.constant 0 : i32
    return %c0_i32, %c0_i32_0 : i32, i32
  }
  func.func @transform_2(%arg0: i32) -> (i32, i32) {
    %c0_i32 = arith.constant 0 : i32
    %c0_i32_0 = arith.constant 0 : i32
    %c0_i32_1 = arith.constant 0 : i32
    return %c0_i32, %c0_i32_0 : i32, i32
  }
  func.func @transform_3(%arg0: i32) -> (i32, i32) {
    %c0_i32 = arith.constant 0 : i32
    %c0_i32_0 = arith.constant 0 : i32
    %c0_i32_1 = arith.constant 0 : i32
    return %c0_i32, %c0_i32_0 : i32, i32
  }
  func.func @transform_4(%arg0: i32) -> (i32, i32) {
    %c0_i32 = arith.constant 0 : i32
    %c0_i32_0 = arith.constant 0 : i32
    %c0_i32_1 = arith.constant 0 : i32
    return %c0_i32, %c0_i32_0 : i32, i32
  }
  func.func @transform_5(%arg0: i32) -> (i32, i32) {
    %c0_i32 = arith.constant 0 : i32
    %c0_i32_0 = arith.constant 0 : i32
    return %arg0, %c0_i32 : i32, i32
  }
}

</mosaic_0001>

<llo_original>
// kernel: _mlp_forward_impl.1
$region0: #{_mlp_forward_impl.1}
  #allocation0 [shape = 'u32[]', space=smem, size = 0x4, offset = 0x4, fixed_abs, tag = 'smem constant byte address 0x4 - core index']
  #allocation1 [shape = 'u32[72,128]{1,0:T(1,128)}', space=vmem, size = 0x9000, scoped, tag = 'internal scratch']
  %s0 = inlined_call_operand.vmem [shape: f32[16,32], index: 0, kind: input, shape index: {}]
  %s1 = inlined_call_operand.vmem [shape: bf16[32,32], index: 1, kind: input, shape index: {}]
  %s2 = inlined_call_operand.vmem [shape: f32[1,32], index: 2, kind: input, shape index: {}]
  %s3 = inlined_call_operand.vmem [shape: bf16[32,32], index: 3, kind: input, shape index: {}]
  %s4 = inlined_call_operand.vmem [shape: f32[1,32], index: 4, kind: input, shape index: {}]
  %s5 = inlined_call_operand.hbm [shape: f32[16,32], index: 5, kind: output, shape index: {}]
  %s6 = sld [smem:[#allocation0]]
  $region30: #{_mlp_forward_impl.1} parent=0
    _
  %s8 = ssub.s32 1, %s6
  %s9 = scalar_select 0, %s8, %s6
  $region1: #{_mlp_forward_impl.1} parent=0
    #allocation2 [shape = 'u8[8192]{0}', space=vmem, size = 0x2000, scoped, tag = 'output window, operand 0, single buffered']
    #allocation3 [shape = 's32[1]{0}', space=sflag, size = 0x4, scoped, tag = 'scoped memory for _mlp_forward_impl.1']
    %10 = vsyncpa [#allocation3], 0
    // Predicated region
    $region2: #{_mlp_forward_impl.1} parent=1 // pred_check
      _
    $region3: #{_mlp_forward_impl.1} parent=1 // pred_check_branch
      %12 = sbr.rel (0) target = $region5
    $region4: #{_mlp_forward_impl.1} parent=1 // pred_region
      _
    $region5: #{_mlp_forward_impl.1} parent=1 // pred_fallthru
      _
    // Predicated region
    $region6: #{_mlp_forward_impl.1} parent=1 // pred_check
      _
    $region7: #{_mlp_forward_impl.1} parent=1 // pred_check_branch
      %14 = sbr.rel (0) target = $region9
    $region8: #{_mlp_forward_impl.1} parent=1 // pred_region
      _
    $region9: #{_mlp_forward_impl.1} parent=1 // pred_fallthru
      _
    // Predicated region
    $region10: #{_mlp_forward_impl.1} parent=1 // pred_check
      _
    $region11: #{_mlp_forward_impl.1} parent=1 // pred_check_branch
      %16 = sbr.rel (0) target = $region13
    $region12: #{_mlp_forward_impl.1} parent=1 // pred_region
      _
    $region13: #{_mlp_forward_impl.1} parent=1 // pred_fallthru
      _
    // Predicated region
    $region14: #{_mlp_forward_impl.1} parent=1 // pred_check
      _
    $region15: #{_mlp_forward_impl.1} parent=1 // pred_check_branch
      %18 = sbr.rel (0) target = $region17
    $region16: #{_mlp_forward_impl.1} parent=1 // pred_region
      _
    $region17: #{_mlp_forward_impl.1} parent=1 // pred_fallthru
      _
    // Predicated region
    $region18: #{_mlp_forward_impl.1} parent=1 // pred_check
      _
    $region19: #{_mlp_forward_impl.1} parent=1 // pred_check_branch
      %20 = sbr.rel (0) target = $region21
    $region20: #{_mlp_forward_impl.1} parent=1 // pred_region
      _
    $region21: #{_mlp_forward_impl.1} parent=1 // pred_fallthru
      _
    %v22 = vld [vmem:[%s0] sm:$0xff]
    %v23 = vld [vmem:[%s0 + $0x8] sm:$0xff]
    %v24 = vpack.c.bf16 %v23, %v22
    %v25 = vld [vmem:[%s1] sm:$0xf]
    %v26 = vld [vmem:[%s1 + $0x4] sm:$0xf]
    %v27 = vld [vmem:[%s1 + $0x8] sm:$0xf]
    %v28 = vld [vmem:[%s1 + $0xc] sm:$0xf]
    %v29 = vld [vmem:[%s2] sm:$0x1]
    %v31 = vperm.slane %v29, 0
    %v37 = vunpack.c.l.b16 %v25
    %v38 = vunpack.c.l.b16 %v26
    %v39 = vunpack.c.l.b16 %v27
    %v40 = vunpack.c.l.b16 %v28
    %v41 = vpack.c.b16 %v38, %v37
    %v42 = vpack.c.b16 %v40, %v39
    %vm45 = vcmask 261120
    %v47 = vsel %vm45, %v24, 0
    %49 = vmatpush.bf16.msra.mxu0 0
    %50 = vmatpush.bf16.msra.mxu0 0
    %51 = vmatpush.bf16.msra.mxu0 0
    %52 = vmatpush.bf16.msra.mxu0 0
    %53 = vmatpush.bf16.msra.mxu0 0
    %54 = vmatpush.bf16.msra.mxu0 0
    %55 = vmatpush.bf16.msra.mxu0 %v42
    %56 = vmatpush.bf16.msra.mxu0 %v41
    %57 = vmatmul.bf16.gmra.mxu0 %v47
    %v58 = vpop.f32.mrf.mxu0
    %v59 = vadd.f32 %v31, %v58
    %v60 = vpop.f32.mrf.mxu0
    %v61 = vadd.f32 %v31, %v60
    %62 = vdwg.mxu0
    %v63 = vmul.f32 %v59, 0.01
    %v64 = vmul.f32 %v61, 0.01
    %v65 = vmax.f32 %v59, %v63
    %v66 = vmax.f32 %v61, %v64
    %v67 = vpack.c.bf16 %v66, %v65
    %v68 = vld [vmem:[%s3] sm:$0xf]
    %v69 = vld [vmem:[%s3 + $0x4] sm:$0xf]
    %v70 = vld [vmem:[%s3 + $0x8] sm:$0xf]
    %v71 = vld [vmem:[%s3 + $0xc] sm:$0xf]
    %v72 = vld [vmem:[%s4] sm:$0x1]
    %v74 = vperm.slane %v72, 0
    %v80 = vunpack.c.l.b16 %v68
    %v81 = vunpack.c.l.b16 %v69
    %v82 = vunpack.c.l.b16 %v70
    %v83 = vunpack.c.l.b16 %v71
    %v84 = vpack.c.b16 %v81, %v80
    %v85 = vpack.c.b16 %v83, %v82
    %v89 = vsel %vm45, %v67, 0
    %91 = vmatpush.bf16.msra.mxu0 0
    %92 = vmatpush.bf16.msra.mxu0 0
    %93 = vmatpush.bf16.msra.mxu0 0
    %94 = vmatpush.bf16.msra.mxu0 0
    %95 = vmatpush.bf16.msra.mxu0 0
    %96 = vmatpush.bf16.msra.mxu0 0
    %97 = vmatpush.bf16.msra.mxu0 %v85
    %98 = vmatpush.bf16.msra.mxu0 %v84
    %99 = vmatmul.bf16.gmra.mxu0 %v89
    %v100 = vpop.f32.mrf.mxu0
    %v101 = vadd.f32 %v74, %v100
    %v102 = vpop.f32.mrf.mxu0
    %v103 = vadd.f32 %v74, %v102
    %104 = vdwg.mxu0
    %v105 = vmul.f32 %v101, 0.01
    %v106 = vmul.f32 %v103, 0.01
    %v107 = vmax.f32 %v101, %v105
    %v108 = vmax.f32 %v103, %v106
    %109 = vst.msk [vmem:[#allocation2] sm:$0xff] %vm45, %v107
    %110 = vst.msk [vmem:[#allocation2 + $0x8] sm:$0xff] %vm45, %v108
    // Predicated region
    $region22: #{_mlp_forward_impl.1} parent=1 // pred_check
      _
    $region23: #{_mlp_forward_impl.1} parent=1 // pred_check_branch
      %112 = sbr.rel (0) target = $region25
    $region24: #{_mlp_forward_impl.1} parent=1 // pred_region
      %114 = vsyncadd [#allocation3], 0
      %s115 = sshll.u32 [#allocation2], 4
      %s116 = int_to_ptr.vmem [resolvable:$true] %s115
      %s117 = sshll.u32 %s5, 4
      %s118 = int_to_ptr.hbm [resolvable:$true] %s117
      %123 = dma.vmem_to_hbm [thread:$0]  %s116, 256, %s118, [#allocation3], 128, 128, 8
    $region25: #{_mlp_forward_impl.1} parent=1 // pred_fallthru
      _
    // Predicated region
    $region26: #{_mlp_forward_impl.1} parent=1 // pred_check
      _
    $region27: #{_mlp_forward_impl.1} parent=1 // pred_check_branch
      %125 = sbr.rel (0) target = $region29
    $region28: #{_mlp_forward_impl.1} parent=1 // pred_region
      %127 = dma.done [#allocation3], 256
    $region29: #{_mlp_forward_impl.1} parent=1 // pred_fallthru
      _
    %128 = vsyncpa [#allocation3], 1

</llo_original>
